<compile_context>
chip_gen: v6e
topology: v6e:2x2x1
jax: 0.10.0
libtpu: 0.0.40
codegen_flags: <defaults>
</compile_context>

<pallas_src>
import jax
import jax.numpy as jnp
import numpy as np
from jax.experimental import pallas as pl
from jax.experimental.pallas import tpu as pltpu


def _round_up(x, m):
    return (x + m - 1) // m * m


def _largest_divisor_leq(n, cap):
    cap = max(1, min(n, cap))
    for d in range(cap, 0, -1):
        if n % d == 0:
            return d
    return 1


def _vmem_capacity_bytes():
    """Physical VMEM of the local part; conservative fallback (v7x per-TC)."""
    try:
        return int(pltpu.get_tpu_info().vmem_capacity_bytes)
    except Exception:
        return 64 * 1024 * 1024


def _pick_nb(N, cap):
    """Largest divisor of N <= cap, preferring an even number of grid steps
    (N // Nb even) so both v7x TensorCores get balanced shards."""
    cap = max(1, min(N, cap))
    divisors = [d for d in range(1, cap + 1) if N % d == 0]
    even = [d for d in divisors if (N // d) % 2 == 0]
    return max(even) if even else max(divisors)


# ---------------------------------------------------------------------------
# Fused single-pass kernel: one grid step handles Nb batch elements.
# ---------------------------------------------------------------------------
def _fused_kernel(x1_ref, x2_ref, w_ref, b_ref, o_ref):
    """x1/x2/o : (Nb, C, HW); w : (2C, C) with 1/HW folded in; b : (1, C)."""
    x1 = x1_ref[...]
    x2 = x2_ref[...]
    s1 = jnp.sum(x1, axis=-1, dtype=jnp.float32)                  # (Nb, C)
    s2 = jnp.sum(x2, axis=-1, dtype=jnp.float32)                  # (Nb, C)
    m = jnp.concatenate([s1, s2], axis=-1)                        # (Nb, 2C)
    logits = jnp.dot(m, w_ref[...], preferred_element_type=jnp.float32)
    att = jax.nn.sigmoid(logits + b_ref[...])                     # (Nb, C) f32
    # Elementwise apply in the input dtype: bf16-native VALU on v6e/v7x and no
    # full-tile f32 temporaries; identical numerics for f32 inputs.
    att_c = att.astype(x1.dtype)[:, :, None]
    o_ref[...] = x1 * att_c + x2


# ---------------------------------------------------------------------------
# Two-pass path, pass 1: GAP + 1x1 conv + sigmoid, tiled over HW (reduction).
# ---------------------------------------------------------------------------
def _gap_att_kernel(x1_ref, x2_ref, w_ref, b_ref, att_ref, acc1_ref, acc2_ref):
    """grid = (batch, hw_tiles); hw is the trailing (arbitrary) reduction axis.

    x1/x2 : (1, C, hw_tile); w : (2C, C); b : (1, C)
    att   : (1, C, 1) output; acc1/acc2 : (1, C) f32 scratch accumulators.
    """
    h = pl.program_id(1)

    @pl.when(h == 0)
    def _():
        acc1_ref[...] = jnp.zeros_like(acc1_ref)
        acc2_ref[...] = jnp.zeros_like(acc2_ref)

    acc1_ref[...] += jnp.sum(x1_ref[...], axis=-1, dtype=jnp.float32)
    acc2_ref[...] += jnp.sum(x2_ref[...], axis=-1, dtype=jnp.float32)

    @pl.when(h == pl.num_programs(1) - 1)
    def _():
        m = jnp.concatenate([acc1_ref[...], acc2_ref[...]], axis=-1)   # (1, 2C)
        logits = jnp.dot(m, w_ref[...], preferred_element_type=jnp.float32)
        att = jax.nn.sigmoid(logits + b_ref[...])                      # (1, C)
        att_ref[...] = att[:, :, None].astype(att_ref.dtype)           # (1, C, 1)


# ---------------------------------------------------------------------------
# Two-pass path, pass 2: out = x1 * att + x2, fully tiled over (batch, HW).
# ---------------------------------------------------------------------------
def _apply_kernel(att_ref, x1_ref, x2_ref, o_ref):
    x1 = x1_ref[...]
    x2 = x2_ref[...]
    att = att_ref[...].astype(x1.dtype)                            # (1, C, 1)
    o_ref[...] = x1 * att + x2


# ---------------------------------------------------------------------------
# Wrapper.
# ---------------------------------------------------------------------------
def channel_att(x1, x2, conv_w, conv_b, *, force_two_pass=False):
    """ChannelAtt forward. x1, x2: (N, C, H, W). conv_w: (C, 2C, 1, 1). conv_b: (C,)."""
    N, C, H, W = x1.shape
    HW = H * W
    dtype = x1.dtype
    itemsize = jnp.dtype(dtype).itemsize

    # 1x1 conv applied to GAP(cat(x1,x2)) == (Nb,2C) @ (2C,C) matmul.  Fold the
    # 1/HW mean scale into the weight so the kernels only do raw lane sums.
    w_comb = (conv_w.reshape(C, 2 * C).astype(jnp.float32)
              * jnp.float32(1.0 / HW)).T                           # (2C, C)
    b = conv_b.reshape(1, C).astype(jnp.float32)

    vmem_cap = _vmem_capacity_bytes()
    fused_vmem_limit = int(vmem_cap * 0.8)        # ~102 MiB on 128 MiB parts, ~51 MiB on v7x
    # Per step the fused path holds (3 arrays x 2 buffers x tile) + ~1 tile of
    # compute temporaries -> one tile budget of limit/8.
    fused_tile_budget = fused_vmem_limit // 8

    slab_bytes = C * HW * itemsize                # one batch element of one array
    use_fused = (not force_two_pass) and slab_bytes <= fused_tile_budget

    x1f = x1.reshape(N, C, HW)                    # free metadata reshape
    x2f = x2.reshape(N, C, HW)

    if use_fused:
        # Block batch elements together for bigger DMAs, but keep >= 2 grid
        # steps (preferably an even count) so both v7x TensorCores get work.
        nb_cap = max(1, fused_tile_budget // max(slab_bytes, 1))
        if N >= 2:
            nb_cap = min(nb_cap, N // 2)
        Nb = _pick_nb(N, nb_cap)

        out = pl.pallas_call(
            _fused_kernel,
            out_shape=jax.ShapeDtypeStruct((N, C, HW), dtype),
            grid=(N // Nb,),
            in_specs=[
                pl.BlockSpec((Nb, C, HW), lambda n: (n, 0, 0)),
                pl.BlockSpec((Nb, C, HW), lambda n: (n, 0, 0)),
                pl.BlockSpec((2 * C, C), lambda n: (0, 0)),
                pl.BlockSpec((1, C), lambda n: (0, 0)),
            ],
            out_specs=pl.BlockSpec((Nb, C, HW), lambda n: (n, 0, 0)),
            compiler_params=pltpu.CompilerParams(
                dimension_semantics=("parallel",),
                vmem_limit_bytes=fused_vmem_limit,
            ),
        )(x1f, x2f, w_comb, b)
        return out.reshape(N, C, H, W)

    # ----- Two-pass fallback for very large per-batch slabs -----------------
    two_pass_vmem_limit = max(32 * 1024 * 1024, vmem_cap // 2)
    tile_target_bytes = vmem_cap // 16            # ~8 MiB (v5e/v6e), ~4 MiB (v7x)

    # Pad HW only to a multiple of 128 (waste bounded < 128 lanes); pick the HW
    # tile as a multiple-of-128 divisor of HWp closest to the byte target.
    HWp = _round_up(HW, 128)
    lanes_target = max(128, (tile_target_bytes // max(C * itemsize, 1)) // 128 * 128)
    hw_tile = 128 * _largest_divisor_leq(HWp // 128, lanes_target // 128)
    n_hw = HWp // hw_tile

    if HWp != HW:
        x1f = jnp.pad(x1f, ((0, 0), (0, 0), (0, HWp - HW)))
        x2f = jnp.pad(x2f, ((0, 0), (0, 0), (0, HWp - HW)))

    att = pl.pallas_call(
        _gap_att_kernel,
        out_shape=jax.ShapeDtypeStruct((N, C, 1), jnp.float32),
        grid=(N, n_hw),
        in_specs=[
            pl.BlockSpec((1, C, hw_tile), lambda n, h: (n, 0, h)),
            pl.BlockSpec((1, C, hw_tile), lambda n, h: (n, 0, h)),
            pl.BlockSpec((2 * C, C), lambda n, h: (0, 0)),
            pl.BlockSpec((1, C), lambda n, h: (0, 0)),
        ],
        out_specs=pl.BlockSpec((1, C, 1), lambda n, h: (n, 0, 0)),
        scratch_shapes=[pltpu.VMEM((1, C), jnp.float32),
                        pltpu.VMEM((1, C), jnp.float32)],
        compiler_params=pltpu.CompilerParams(
            dimension_semantics=("parallel", "arbitrary"),
            vmem_limit_bytes=two_pass_vmem_limit,
        ),
    )(x1f, x2f, w_comb, b)

    out = pl.pallas_call(
        _apply_kernel,
        out_shape=jax.ShapeDtypeStruct((N, C, HWp), dtype),
        grid=(N, n_hw),
        in_specs=[
            pl.BlockSpec((1, C, 1), lambda n, h: (n, 0, 0)),
            pl.BlockSpec((1, C, hw_tile), lambda n, h: (n, 0, h)),
            pl.BlockSpec((1, C, hw_tile), lambda n, h: (n, 0, h)),
        ],
        out_specs=pl.BlockSpec((1, C, hw_tile), lambda n, h: (n, 0, h)),
        compiler_params=pltpu.CompilerParams(
            dimension_semantics=("parallel", "parallel"),
            vmem_limit_bytes=two_pass_vmem_limit,
        ),
    )(att, x1f, x2f)

    if HWp != HW:
        out = out[:, :, :HW]
    return out.reshape(N, C, H, W)


def channel_att_reference(x1, x2, conv_w, conv_b):
    """Pure-JAX reference mirroring the PyTorch forward exactly."""
    x = jnp.concatenate([x1, x2], axis=1)                     # (N, 2C, H, W)
    g = jnp.mean(x.astype(jnp.float32), axis=(2, 3))          # (N, 2C)
    w = conv_w.reshape(conv_w.shape[0], -1).astype(jnp.float32)
    logits = jnp.einsum("nc,oc->no", g, w) + conv_b.astype(jnp.float32)
    att = jax.nn.sigmoid(logits)[:, :, None, None]            # (N, C, 1, 1)
    out = x1.astype(jnp.float32) * att + x2.astype(jnp.float32)
    return out.astype(x1.dtype)


if __name__ == "__main__":
    key = jax.random.PRNGKey(0)

    def make(shape_key, N, C, H, W):
        k1, k2, kw, kb = jax.random.split(shape_key, 4)
        x1 = jax.random.normal(k1, (N, C, H, W), dtype=jnp.float32)
        x2 = jax.random.normal(k2, (N, C, H, W), dtype=jnp.float32)
        conv_w = 0.1 * jax.random.normal(kw, (C, 2 * C, 1, 1), dtype=jnp.float32)
        conv_b = 0.1 * jax.random.normal(kb, (C,), dtype=jnp.float32)
        return x1, x2, conv_w, conv_b

    k_a, k_b = jax.random.split(key)

    # Config A: fused single-pass path (full-dim blocks, no padding, HW=256).
    x1, x2, cw, cb = make(k_a, 2, 4, 16, 16)
    ref = channel_att_reference(x1, x2, cw, cb)
    out = jax.block_until_ready(channel_att(x1, x2, cw, cb))
    np.testing.assert_allclose(np.asarray(out), np.asarray(ref), rtol=1e-4, atol=1e-5)

    # Same inputs through the two-pass (huge-slab fallback) path.
    out2 = jax.block_until_ready(channel_att(x1, x2, cw, cb, force_two_pass=True))
    np.testing.assert_allclose(np.asarray(out2), np.asarray(ref), rtol=1e-4, atol=1e-5)

    # Config B: C=5, HW=100 (unaligned) -> fused path with full-dim (exempt)
    # blocks and masked tail stores; no pad/slice copies.
    x1b, x2b, cwb, cbb = make(k_b, 2, 5, 10, 10)
    refb = channel_att_reference(x1b, x2b, cwb, cbb)
    outb = jax.block_until_ready(channel_att(x1b, x2b, cwb, cbb))
    np.testing.assert_allclose(np.asarray(outb), np.asarray(refb), rtol=1e-4, atol=1e-5)

    # Config B through the two-pass path (exercises HW->128 padding + unpad).
    outb2 = jax.block_until_ready(channel_att(x1b, x2b, cwb, cbb, force_two_pass=True))
    np.testing.assert_allclose(np.asarray(outb2), np.asarray(refb), rtol=1e-4, atol=1e-5)

    print("KERNEL_OK")
</pallas_src>

<mosaic_0001>
module attributes {stable_mosaic.version = 11 : i64} {
  func.func @_fused_kernel(%arg0: i32, %arg1: memref<1x4x256xf32, #tpu.memory_space<vmem>>, %arg2: memref<1x4x256xf32, #tpu.memory_space<vmem>>, %arg3: memref<8x4xf32, #tpu.memory_space<vmem>>, %arg4: memref<1x4xf32, #tpu.memory_space<vmem>>, %arg5: memref<1x4x256xf32, #tpu.memory_space<vmem>>) attributes {dimension_semantics = [#tpu.dimension_semantics<parallel>], iteration_bounds = array<i64: 2>, scalar_prefetch = 0 : i64, scratch_operands = 0 : i64, tpu.core_type = #tpu.core_type<tc>, window_params = [{transform_indices = @transform_0, window_bounds = array<i64: 1, 4, 256>}, {transform_indices = @transform_1, window_bounds = array<i64: 1, 4, 256>}, {pipeline_mode = #tpu.pipeline_mode<synchronous>, transform_indices = @transform_2, window_bounds = array<i64: 8, 4>}, {pipeline_mode = #tpu.pipeline_mode<synchronous>, transform_indices = @transform_3, window_bounds = array<i64: 1, 4>}, {transform_indices = @transform_4, window_bounds = array<i64: 1, 4, 256>}]} {
    %c0 = arith.constant 0 : index
    %c0_0 = arith.constant 0 : index
    %c0_1 = arith.constant 0 : index
    %0 = vector.load %arg1[%c0, %c0_0, %c0_1] : memref<1x4x256xf32, #tpu.memory_space<vmem>>, vector<1x4x256xf32>
    %c0_2 = arith.constant 0 : index
    %c0_3 = arith.constant 0 : index
    %c0_4 = arith.constant 0 : index
    %1 = vector.load %arg2[%c0_2, %c0_3, %c0_4] : memref<1x4x256xf32, #tpu.memory_space<vmem>>, vector<1x4x256xf32>
    %cst = arith.constant dense<0.000000e+00> : vector<1x4xf32>
    %2 = vector.multi_reduction <add>, %0, %cst [2] : vector<1x4x256xf32> to vector<1x4xf32>
    %cst_5 = arith.constant dense<0.000000e+00> : vector<1x4xf32>
    %3 = vector.multi_reduction <add>, %1, %cst_5 [2] : vector<1x4x256xf32> to vector<1x4xf32>
    %4 = tpu.concatenate %2, %3 in 1 : vector<1x4xf32>, vector<1x4xf32> -> vector<1x8xf32>
    %c0_6 = arith.constant 0 : index
    %c0_7 = arith.constant 0 : index
    %5 = vector.load %arg3[%c0_6, %c0_7] : memref<8x4xf32, #tpu.memory_space<vmem>>, vector<8x4xf32>
    %cst_8 = arith.constant dense<0.000000e+00> : vector<1x4xf32>
    %6 = tpu.matmul %4, %5, %cst_8 {dimension_numbers = #tpu.dot_dimension_numbers<[1], [0], [0], [1], [0, 0, 1, 1], [], []>} : vector<1x8xf32>, vector<8x4xf32>, vector<1x4xf32> -> vector<1x4xf32>
    %c0_9 = arith.constant 0 : index
    %c0_10 = arith.constant 0 : index
    %7 = vector.load %arg4[%c0_9, %c0_10] : memref<1x4xf32, #tpu.memory_space<vmem>>, vector<1x4xf32>
    %8 = arith.addf %6, %7 : vector<1x4xf32>
    %9 = arith.negf %8 : vector<1x4xf32>
    %10 = math.exp %9 : vector<1x4xf32>
    %cst_11 = arith.constant 1.000000e+00 : f32
    %11 = vector.broadcast %cst_11 : f32 to vector<1x4xf32>
    %12 = arith.addf %11, %10 : vector<1x4xf32>
    %13 = arith.divf %11, %12 : vector<1x4xf32>
    %14 = vector.shape_cast %13 : vector<1x4xf32> to vector<1x4x1xf32>
    %15 = vector.broadcast %14 : vector<1x4x1xf32> to vector<1x4x256xf32>
    %16 = arith.mulf %0, %15 : vector<1x4x256xf32>
    %17 = arith.addf %16, %1 : vector<1x4x256xf32>
    %c0_12 = arith.constant 0 : index
    %c0_13 = arith.constant 0 : index
    %c0_14 = arith.constant 0 : index
    %18 = vector.load %arg5[%c0_12, %c0_13, %c0_14] : memref<1x4x256xf32, #tpu.memory_space<vmem>>, vector<1x4x256xf32>
    tpu.vector_store %arg5[%c0_12, %c0_13, %c0_14], %17 {strides = array<i32>} : memref<1x4x256xf32, #tpu.memory_space<vmem>>, vector<1x4x256xf32>,
    return
  }
  func.func @transform_0(%arg0: i32) -> (i32, i32, i32) {
    %c0_i32 = arith.constant 0 : i32
    %c0_i32_0 = arith.constant 0 : i32
    %c0_i32_1 = arith.constant 0 : i32
    return %arg0, %c0_i32, %c0_i32_0 : i32, i32, i32
  }
  func.func @transform_1(%arg0: i32) -> (i32, i32, i32) {
    %c0_i32 = arith.constant 0 : i32
    %c0_i32_0 = arith.constant 0 : i32
    %c0_i32_1 = arith.constant 0 : i32
    return %arg0, %c0_i32, %c0_i32_0 : i32, i32, i32
  }
  func.func @transform_2(%arg0: i32) -> (i32, i32) {
    %c0_i32 = arith.constant 0 : i32
    %c0_i32_0 = arith.constant 0 : i32
    %c0_i32_1 = arith.constant 0 : i32
    return %c0_i32, %c0_i32_0 : i32, i32
  }
  func.func @transform_3(%arg0: i32) -> (i32, i32) {
    %c0_i32 = arith.constant 0 : i32
    %c0_i32_0 = arith.constant 0 : i32
    %c0_i32_1 = arith.constant 0 : i32
    return %c0_i32, %c0_i32_0 : i32, i32
  }
  func.func @transform_4(%arg0: i32) -> (i32, i32, i32) {
    %c0_i32 = arith.constant 0 : i32
    %c0_i32_0 = arith.constant 0 : i32
    %c0_i32_1 = arith.constant 0 : i32
    return %arg0, %c0_i32, %c0_i32_0 : i32, i32, i32
  }
}

</mosaic_0001>

<llo_original>
// kernel: tpu_custom_call.1
$region0: #{tpu_custom_call.1}
  #allocation0 [shape = 'u32[]', space=smem, size = 0x4, offset = 0x4, fixed_abs, tag = 'smem constant byte address 0x4 - core index']
  #allocation1 [shape = 'u32[144,128]{1,0:T(1,128)}', space=vmem, size = 0x12000, scoped, tag = 'internal scratch']
  %s0 = inlined_call_operand.hbm [shape: f32[2,4,256], index: 0, kind: input, shape index: {}]
  %s1 = inlined_call_operand.hbm [shape: f32[2,4,256], index: 1, kind: input, shape index: {}]
  %s2 = inlined_call_operand.vmem [shape: f32[8,4], index: 2, kind: input, shape index: {}]
  %s3 = inlined_call_operand.vmem [shape: f32[1,4], index: 3, kind: input, shape index: {}]
  %s4 = inlined_call_operand.hbm [shape: f32[2,4,256], index: 4, kind: output, shape index: {}]
  %s5 = sld [smem:[#allocation0]]
  $region57: #{tpu_custom_call.1} parent=0
    _
  %s7 = ssub.s32 1, %s5
  %s8 = scalar_select 0, %s7, %s5
  $region1: #{tpu_custom_call.1} parent=0
    #allocation2 [shape = 'u8[8192]{0}', space=vmem, size = 0x2000, scoped, tag = 'input window, operand 0']
    #allocation3 [shape = 's32[2]{0}', space=sflag, size = 0x8, scoped, tag = 'scoped memory for tpu_custom_call.1']
    #allocation4 [shape = 's32[2]{0}', space=sflag, size = 0x8, scoped, tag = 'scoped memory for tpu_custom_call.1']
    #allocation5 [shape = 'u8[8192]{0}', space=vmem, size = 0x2000, scoped, tag = 'input window, operand 1']
    #allocation6 [shape = 's32[2]{0}', space=sflag, size = 0x8, scoped, tag = 'scoped memory for tpu_custom_call.1']
    #allocation7 [shape = 'u8[8192]{0}', space=vmem, size = 0x2000, scoped, tag = 'output window, operand 0']
    %9 = vsyncpa [#allocation3], 0
    %s10 = scalar_lea.sflag [#allocation3], 1
    %11 = vsyncpa %s10, 0
    %12 = vsyncpa [#allocation6], 0
    %s13 = scalar_lea.sflag [#allocation6], 1
    %14 = vsyncpa %s13, 0
    %15 = vsyncpa [#allocation4], 0
    %s16 = scalar_lea.sflag [#allocation4], 1
    %17 = vsyncpa %s16, 0
    loop: start=0, step=1, limit=4
    $region2: #{tpu_custom_call.1} parent=1 // loop_pre_header
      _
    $region3: #{tpu_custom_call.1} parent=1 // loop_header
      %s19 = sphi 0, %s23
      %p20 = scmp.ge.s32.totalorder %s19, 4
      %s29 = sphi 0, %s31
      %s32 = sphi 0, %s29
      %s33 = sphi 0, %s32
      %s49 = sphi 0, %s33
      %s55 = sphi 0, %s57
      %s58 = sphi 0, %s55
      %s59 = sphi 0, %s58
      %s75 = sphi 0, %s59
      %s79 = sphi 0, %s79
      %s81 = sphi 0, %s79
      %s82 = sphi 0, %s81
      %s96 = sphi 0, %s82
      %s100 = sphi 0, %s100
      %s102 = sphi 0, %s100
      %s103 = sphi 0, %s102
      %s117 = sphi 0, %s103
      %s123 = sphi 0, %s125
      %s126 = sphi 0, %s123
      %s127 = sphi 0, %s126
      %s143 = sphi 0, %s127
    $region4: #{tpu_custom_call.1} parent=1 // loop_header_branch
      %22 = sbr.rel (%p20) target = $region8
    $region5: #{tpu_custom_call.1} parent=1 // loop_body
      %s24 = ssub.s32 %s19, 1
      %s25 = ssub.s32 %s19, 2
      %s26 = sadd.s32 %s19, 1
      %s27 = ssub.s32 %s19, %s26
      %p28 = scmp.eq.s32.totalorder %s27, 0
      %s30 = sadd.s32 %s29, 1
      %s31 = scalar_select %p28, %s29, %s30
      %p34 = pneg %p28
      %p35 = scmp.eq.s32.totalorder %s19, 1
      %p36 = por %p34, %p35
      %p37 = scmp.ne.s32.totalorder %s29, %s32
      %p38 = scmp.eq.s32.totalorder %s19, 0
      %p39 = por %p37, %p38
      %p40 = scmp.ne.s32.totalorder %s29, %s32
      %p41 = scmp.eq.s32.totalorder %s24, 1
      %p42 = por %p40, %p41
      %p43 = scmp.ne.s32.totalorder %s32, %s33
      %p44 = scmp.eq.s32.totalorder %s24, 0
      %p45 = por %p43, %p44
      %p46 = scmp.ne.s32.totalorder %s32, %s33
      %p47 = scmp.eq.s32.totalorder %s25, 1
      %p48 = por %p46, %p47
      %p50 = scmp.ne.s32.totalorder %s33, %s49
      %p51 = scmp.eq.s32.totalorder %s25, 0
      %p52 = por %p50, %p51
      %s53 = ssub.s32 %s19, %s26
      %p54 = scmp.eq.s32.totalorder %s53, 0
      %s56 = sadd.s32 %s55, 1
      %s57 = scalar_select %p54, %s55, %s56
      %p60 = pneg %p54
      %p61 = scmp.eq.s32.totalorder %s19, 1
      %p62 = por %p60, %p61
      %p63 = scmp.ne.s32.totalorder %s55, %s58
      %p64 = scmp.eq.s32.totalorder %s19, 0
      %p65 = por %p63, %p64
      %p66 = scmp.ne.s32.totalorder %s55, %s58
      %p67 = scmp.eq.s32.totalorder %s24, 1
      %p68 = por %p66, %p67
      %p69 = scmp.ne.s32.totalorder %s58, %s59
      %p70 = scmp.eq.s32.totalorder %s24, 0
      %p71 = por %p69, %p70
      %p72 = scmp.ne.s32.totalorder %s58, %s59
      %p73 = scmp.eq.s32.totalorder %s25, 1
      %p74 = por %p72, %p73
      %p76 = scmp.ne.s32.totalorder %s59, %s75
      %p77 = scmp.eq.s32.totalorder %s25, 0
      %p78 = por %p76, %p77
      %s80 = sadd.s32 %s79, 1
      %p83 = scmp.eq.s32.totalorder %s19, 1
      %p84 = scmp.ne.s32.totalorder %s79, %s81
      %p85 = scmp.eq.s32.totalorder %s19, 0
      %p86 = por %p84, %p85
      %p87 = scmp.ne.s32.totalorder %s79, %s81
      %p88 = scmp.eq.s32.totalorder %s24, 1
      %p89 = por %p87, %p88
      %p90 = scmp.ne.s32.totalorder %s81, %s82
      %p91 = scmp.eq.s32.totalorder %s24, 0
      %p92 = por %p90, %p91
      %p93 = scmp.ne.s32.totalorder %s81, %s82
      %p94 = scmp.eq.s32.totalorder %s25, 1
      %p95 = por %p93, %p94
      %p97 = scmp.ne.s32.totalorder %s82, %s96
      %p98 = scmp.eq.s32.totalorder %s25, 0
      %p99 = por %p97, %p98
      %s101 = sadd.s32 %s100, 1
      %p104 = scmp.eq.s32.totalorder %s19, 1
      %p105 = scmp.ne.s32.totalorder %s100, %s102
      %p106 = scmp.eq.s32.totalorder %s19, 0
      %p107 = por %p105, %p106
      %p108 = scmp.ne.s32.totalorder %s100, %s102
      %p109 = scmp.eq.s32.totalorder %s24, 1
      %p110 = por %p108, %p109
      %p111 = scmp.ne.s32.totalorder %s102, %s103
      %p112 = scmp.eq.s32.totalorder %s24, 0
      %p113 = por %p111, %p112
      %p114 = scmp.ne.s32.totalorder %s102, %s103
      %p115 = scmp.eq.s32.totalorder %s25, 1
      %p116 = por %p114, %p115
      %p118 = scmp.ne.s32.totalorder %s103, %s117
      %p119 = scmp.eq.s32.totalorder %s25, 0
      %p120 = por %p118, %p119
      %s121 = ssub.s32 %s19, %s26
      %p122 = scmp.eq.s32.totalorder %s121, 0
      %s124 = sadd.s32 %s123, 1
      %s125 = scalar_select %p122, %s123, %s124
      %p128 = pneg %p122
      %p129 = scmp.eq.s32.totalorder %s19, 1
      %p130 = por %p128, %p129
      %p131 = scmp.ne.s32.totalorder %s123, %s126
      %p132 = scmp.eq.s32.totalorder %s19, 0
      %p133 = por %p131, %p132
      %p134 = scmp.ne.s32.totalorder %s123, %s126
      %p135 = scmp.eq.s32.totalorder %s24, 1
      %p136 = por %p134, %p135
      %p137 = scmp.ne.s32.totalorder %s126, %s127
      %p138 = scmp.eq.s32.totalorder %s24, 0
      %p139 = por %p137, %p138
      %p140 = scmp.ne.s32.totalorder %s126, %s127
      %p141 = scmp.eq.s32.totalorder %s25, 1
      %p142 = por %p140, %p141
      %p144 = scmp.ne.s32.totalorder %s127, %s143
      %p145 = scmp.eq.s32.totalorder %s25, 0
      %p146 = por %p144, %p145
      %p147 = scmp.le.s32.totalorder 1, %s19
      %p148 = scmp.lt.s32.totalorder %s19, 3
      %p149 = pnand %p147, %p148
      %p150 = pneg %p149
      // Predicated region
      $region9: #{tpu_custom_call.1} parent=5 // pred_check
        _
      $region10: #{tpu_custom_call.1} parent=5 // pred_check_branch
        %152 = sbr.rel (%p149) target = $region12
      $region11: #{tpu_custom_call.1} parent=5 // pred_region
        %s153 = ssub.s32 %s19, 1
        // Predicated region
        $region13: #{tpu_custom_call.1} parent=11 // pred_check
          %p154 = pneg %p92
        $region14: #{tpu_custom_call.1} parent=11 // pred_check_branch
          %156 = sbr.rel (%p154) target = $region16
        $region15: #{tpu_custom_call.1} parent=11 // pred_region
          _
        $region16: #{tpu_custom_call.1} parent=11 // pred_fallthru
          _
        // Predicated region
        $region17: #{tpu_custom_call.1} parent=11 // pred_check
          %p157 = pneg %p113
        $region18: #{tpu_custom_call.1} parent=11 // pred_check_branch
          %159 = sbr.rel (%p157) target = $region20
        $region19: #{tpu_custom_call.1} parent=11 // pred_region
          _
        $region20: #{tpu_custom_call.1} parent=11 // pred_fallthru
          _
      $region12: #{tpu_custom_call.1} parent=5 // pred_fallthru
        _
      %p160 = scmp.lt.s32.totalorder %s19, 2
      // Predicated region
      $region21: #{tpu_custom_call.1} parent=5 // pred_check
        %p161 = pneg %p160
      $region22: #{tpu_custom_call.1} parent=5 // pred_check_branch
        %163 = sbr.rel (%p161) target = $region24
      $region23: #{tpu_custom_call.1} parent=5 // pred_region
        // Predicated region
        $region25: #{tpu_custom_call.1} parent=23 // pred_check
          %p164 = pneg %p39
        $region26: #{tpu_custom_call.1} parent=23 // pred_check_branch
          %166 = sbr.rel (%p164) target = $region28
        $region27: #{tpu_custom_call.1} parent=23 // pred_region
          %s167 = sand.u32 %s29, 1
          %s168 = scalar_lea.sflag [#allocation3], %s167
          %s169 = sand.u32 %s29, 1
          %s170 = smul.addr %s169, 8
          %s171 = scalar_lea.vmem [#allocation2], %s170
          %s173 = ssub.s32 128, 128
          %174 = vsyncadd %s168, %s173
          %s175 = smul.addr %s19, 2
          %s176 = smul.addr %s175, 64
          %s177 = scalar_lea.hbm %s0, %s176
          %s179 = sshll.u32 %s171, 4
          %s180 = int_to_ptr.vmem [resolvable:$true] %s179
          %182 = dma.hbm_to_vmem [thread:$0]  %s177, 128, %s180, %s168
        $region28: #{tpu_custom_call.1} parent=23 // pred_fallthru
          _
        // Predicated region
        $region29: #{tpu_custom_call.1} parent=23 // pred_check
          %p183 = pneg %p65
        $region30: #{tpu_custom_call.1} parent=23 // pred_check_branch
          %185 = sbr.rel (%p183) target = $region32
        $region31: #{tpu_custom_call.1} parent=23 // pred_region
          %s186 = sand.u32 %s55, 1
          %s187 = scalar_lea.sflag [#allocation6], %s186
          %s188 = sand.u32 %s55, 1
          %s189 = smul.addr %s188, 8
          %s190 = scalar_lea.vmem [#allocation5], %s189
          %s192 = ssub.s32 128, 128
          %193 = vsyncadd %s187, %s192
          %s194 = smul.addr %s19, 2
          %s195 = smul.addr %s194, 64
          %s196 = scalar_lea.hbm %s1, %s195
          %s198 = sshll.u32 %s190, 4
          %s199 = int_to_ptr.vmem [resolvable:$true] %s198
          %201 = dma.hbm_to_vmem [thread:$0]  %s196, 128, %s199, %s187
        $region32: #{tpu_custom_call.1} parent=23 // pred_fallthru
          _
      $region24: #{tpu_custom_call.1} parent=5 // pred_fallthru
        _
      %p202 = scmp.le.s32.totalorder 1, %s19
      %p203 = scmp.lt.s32.totalorder %s19, 3
      %p204 = pnand %p202, %p203
      %p205 = pneg %p204
      // Predicated region
      $region33: #{tpu_custom_call.1} parent=5 // pred_check
        _
      $region34: #{tpu_custom_call.1} parent=5 // pred_check_branch
        %207 = sbr.rel (%p204) target = $region36
      $region35: #{tpu_custom_call.1} parent=5 // pred_region
        %s208 = ssub.s32 %s19, 1
        %s209 = sand.u32 %s32, 1
        %s210 = scalar_lea.sflag [#allocation3], %s209
        %s211 = sand.u32 %s32, 1
        %s212 = smul.addr %s211, 8
        %s213 = scalar_lea.vmem [#allocation2], %s212
        // Predicated region
        $region37: #{tpu_custom_call.1} parent=35 // pred_check
          %p214 = pneg %p45
        $region38: #{tpu_custom_call.1} parent=35 // pred_check_branch
          %216 = sbr.rel (%p214) target = $region40
        $region39: #{tpu_custom_call.1} parent=35 // pred_region
          %217 = dma.done %s210, 128
        $region40: #{tpu_custom_call.1} parent=35 // pred_fallthru
          _
        %s218 = sand.u32 %s58, 1
        %s219 = scalar_lea.sflag [#allocation6], %s218
        %s220 = sand.u32 %s58, 1
        %s221 = smul.addr %s220, 8
        %s222 = scalar_lea.vmem [#allocation5], %s221
        // Predicated region
        $region41: #{tpu_custom_call.1} parent=35 // pred_check
          %p223 = pneg %p71
        $region42: #{tpu_custom_call.1} parent=35 // pred_check_branch
          %225 = sbr.rel (%p223) target = $region44
        $region43: #{tpu_custom_call.1} parent=35 // pred_region
          %226 = dma.done %s219, 128
        $region44: #{tpu_custom_call.1} parent=35 // pred_fallthru
          _
        %s227 = sand.u32 %s32, 1
        %s228 = scalar_lea.sflag [#allocation3], %s227
        %s229 = sand.u32 %s32, 1
        %s230 = smul.addr %s229, 8
        %s231 = scalar_lea.vmem [#allocation2], %s230
        %p232 = pneg %p45
        %p233 = pneg %p42
        %s234 = sand.u32 %s58, 1
        %s235 = scalar_lea.sflag [#allocation6], %s234
        %s236 = sand.u32 %s58, 1
        %s237 = smul.addr %s236, 8
        %s238 = scalar_lea.vmem [#allocation5], %s237
        %p239 = pneg %p71
        %p240 = pneg %p68
        %p241 = pneg %p92
        %p242 = pneg %p89
        %p243 = pneg %p113
        %p244 = pneg %p110
        %p245 = pneg %p139
        %p246 = pneg %p136
        %s247 = sand.u32 %s126, 1
        %s248 = scalar_lea.sflag [#allocation4], %s247
        %s249 = sand.u32 %s126, 1
        %s250 = smul.addr %s249, 8
        %s251 = scalar_lea.vmem [#allocation7], %s250
        %v252 = vld [vmem:[%s213] sm:$0xff]
        %v253 = vld [vmem:[%s222] sm:$0xff]
        %v255 = vcombine.high %v252, %v252
        %vm257 = vcmask 1043456
        %v258 = vsel %vm257, %v252, 0.0
        %v259 = vsel %vm257, %v255, 0.0
        %v260 = vadd.f32 %v258, %v259
        %261 = vadd.xlane.f32.xlu0 %v260
        %v262 = vpop.xlane.xlu0 %261
        %v264 = vcombine.high %v253, %v253
        %v266 = vsel %vm257, %v253, 0.0
        %v267 = vsel %vm257, %v264, 0.0
        %v268 = vadd.f32 %v266, %v267
        %269 = vadd.xlane.f32.xlu0 %v268
        %v270 = vpop.xlane.xlu0 %269
        %v272 = vlaneseq
        %v273 = vand.u32 %v272, 127
        %v274 = vlaneseq
        %v275 = vshrl.u32 %v274, 7
        %v276 = vsub.s32 %v273, %v275
        %v277 = vrot.slane %v262, %v276
        %v280 = vadd.s32 %v273, 4294967292
        %v281 = vlaneseq
        %v282 = vshrl.u32 %v281, 7
        %v283 = vsub.s32 %v280, %v282
        %v284 = vrot.slane %v270, %v283
        %vm286 = vcmask 31744
        %v287 = vsel %vm286, %v277, %v284
        %v288 = vld [vmem:[%s2] sm:$0xff]
        %v289 = vld [vmem:[%s3] sm:$0x1]
        %vm290 = vcmask 64512
        %v292 = vsel %vm290, %v287, 0
        %294 = vmatprep.subr.mxu0 0.0
        %295 = vmatpush1.msra.mxu0 0.0
        %296 = vmatprep.subr.mxu0 0.0
        %297 = vmatpush1.msra.mxu0 0.0
        %298 = vmatprep.subr.mxu0 0.0
        %299 = vmatpush1.msra.mxu0 0.0
        %300 = vmatprep.subr.mxu0 0.0
        %301 = vmatpush1.msra.mxu0 0.0
        %302 = vmatprep.subr.mxu0 0.0
        %303 = vmatpush1.msra.mxu0 0.0
        %304 = vmatprep.subr.mxu0 0.0
        %305 = vmatpush1.msra.mxu0 0.0
        %306 = vmatprep.subr.mxu0 0.0
        %307 = vmatpush1.msra.mxu0 0.0
        %308 = vmatprep.subr.mxu0 0.0
        %309 = vmatpush1.msra.mxu0 0.0
        %310 = vmatprep.subr.mxu0 0.0
        %311 = vmatpush1.msra.mxu0 0.0
        %312 = vmatprep.subr.mxu0 0.0
        %313 = vmatpush1.msra.mxu0 0.0
        %314 = vmatprep.subr.mxu0 0.0
        %315 = vmatpush1.msra.mxu0 0.0
        %316 = vmatprep.subr.mxu0 0.0
        %317 = vmatpush1.msra.mxu0 0.0
        %318 = vmatprep.subr.mxu0 0.0
        %319 = vmatpush1.msra.mxu0 0.0
        %320 = vmatprep.subr.mxu0 0.0
        %321 = vmatpush1.msra.mxu0 0.0
        %322 = vmatprep.subr.mxu0 0.0
        %323 = vmatpush1.msra.mxu0 0.0
        %324 = vmatprep.subr.mxu0 0.0
        %325 = vmatpush1.msra.mxu0 %v288
        %326 = vmatprep.subr.mxu0 0.0
        %327 = vmatpush2.msra.mxu0 0.0
        %328 = vmatprep.subr.mxu0 0.0
        %329 = vmatpush2.msra.mxu0 0.0
        %330 = vmatprep.subr.mxu0 0.0
        %331 = vmatpush2.msra.mxu0 0.0
        %332 = vmatprep.subr.mxu0 0.0
        %333 = vmatpush2.msra.mxu0 0.0
        %334 = vmatprep.subr.mxu0 0.0
        %335 = vmatpush2.msra.mxu0 0.0
        %336 = vmatprep.subr.mxu0 0.0
        %337 = vmatpush2.msra.mxu0 0.0
        %338 = vmatprep.subr.mxu0 0.0
        %339 = vmatpush2.msra.mxu0 0.0
        %340 = vmatprep.subr.mxu0 0.0
        %341 = vmatpush2.msra.mxu0 0.0
        %342 = vmatprep.subr.mxu0 0.0
        %343 = vmatpush2.msra.mxu0 0.0
        %344 = vmatprep.subr.mxu0 0.0
        %345 = vmatpush2.msra.mxu0 0.0
        %346 = vmatprep.subr.mxu0 0.0
        %347 = vmatpush2.msra.mxu0 0.0
        %348 = vmatprep.subr.mxu0 0.0
        %349 = vmatpush2.msra.mxu0 0.0
        %350 = vmatprep.subr.mxu0 0.0
        %351 = vmatpush2.msra.mxu0 0.0
        %352 = vmatprep.subr.mxu0 0.0
        %353 = vmatpush2.msra.mxu0 0.0
        %354 = vmatprep.subr.mxu0 0.0
        %355 = vmatpush2.msra.mxu0 0.0
        %356 = vmatprep.subr.mxu0 0.0
        %357 = vmatpush2.msra.mxu0 0.0
        %358 = vmatprep.mubr.f32.mxu0 0.0
        %359 = vmatmul.mubr.f32.gmra.mxu0 %v292
        %v360 = vpop.f32.mrf.mxu0
        %v361 = vadd.f32 %v289, %v360
        %v362 = vpop.f32.mrf.mxu0
        %363 = vdwg.mxu0
        %v364 = vxor.u32 %v361, 2147483648
        %v365 = vmul.f32 %v364, 1.442695
        %v366 = vpow.pop %v365
        %v367 = vadd.f32 %v366, 1.0
        %v368 = vrcp.pop %v367
        %v369 = vmul.f32 1.0, %v368
        %v370 = vlaneseq
        %v371 = vshrl.u32 %v370, 7
        %v372 = vsub.s32 0, %v371
        %v373 = vrot.slane %v369, %v372
        %375 = vbcast.lane.b32.xlu0 %v373, 256
        %v376 = vpop.permute.xlu0 %375
        %v379 = vunpack.c.l.s4 839922192
        %v380 = vunpack.c.0.s8 %v379
        %v381 = vlaneseq
        %v382 = vshrl.u32 %v381, 7
        %v383 = vsub.s32 %v380, %v382
        %v384 = vrot.slane %v376, %v383
        %v386 = vmul.f32 %v252, %v384
        %v387 = vadd.f32 %v386, %v253
        %388 = vst [vmem:[%s251] sm:$0xff] %v387
        %s389 = sand.u32 %s126, 1
        %s390 = scalar_lea.sflag [#allocation4], %s389
        %s391 = sand.u32 %s126, 1
        %s392 = smul.addr %s391, 8
        %s393 = scalar_lea.vmem [#allocation7], %s392
        // Predicated region
        $region45: #{tpu_custom_call.1} parent=35 // pred_check
          %p394 = pneg %p136
        $region46: #{tpu_custom_call.1} parent=35 // pred_check_branch
          %396 = sbr.rel (%p394) target = $region48
        $region47: #{tpu_custom_call.1} parent=35 // pred_region
          %s398 = ssub.s32 128, 128
          %399 = vsyncadd %s390, %s398
          %s400 = smul.addr %s24, 2
          %s401 = smul.addr %s400, 64
          %s402 = scalar_lea.hbm %s4, %s401
          %s404 = sshll.u32 %s393, 4
          %s405 = int_to_ptr.vmem [resolvable:$true] %s404
          %407 = dma.vmem_to_hbm [thread:$0]  %s405, 128, %s402, %s390
        $region48: #{tpu_custom_call.1} parent=35 // pred_fallthru
          _
      $region36: #{tpu_custom_call.1} parent=5 // pred_fallthru
        _
      %p408 = scmp.le.s32.totalorder 2, %s19
      // Predicated region
      $region49: #{tpu_custom_call.1} parent=5 // pred_check
        %p409 = pneg %p408
      $region50: #{tpu_custom_call.1} parent=5 // pred_check_branch
        %411 = sbr.rel (%p409) target = $region52
      $region51: #{tpu_custom_call.1} parent=5 // pred_region
        %s412 = ssub.s32 %s19, 2
        // Predicated region
        $region53: #{tpu_custom_call.1} parent=51 // pred_check
          %p413 = pneg %p142
        $region54: #{tpu_custom_call.1} parent=51 // pred_check_branch
          %415 = sbr.rel (%p413) target = $region56
        $region55: #{tpu_custom_call.1} parent=51 // pred_region
          %s416 = sand.u32 %s127, 1
          %s417 = scalar_lea.sflag [#allocation4], %s416
          %s418 = sand.u32 %s127, 1
          %s419 = smul.addr %s418, 8
          %s420 = scalar_lea.vmem [#allocation7], %s419
          %421 = dma.done %s417, 128
        $region56: #{tpu_custom_call.1} parent=51 // pred_fallthru
          _
      $region52: #{tpu_custom_call.1} parent=5 // pred_fallthru
        _
    $region6: #{tpu_custom_call.1} parent=1 // loop_footer
      %s23 = sadd.s32 1, %s19
    $region7: #{tpu_custom_call.1} parent=1 // loop_footer_branch
      %18 = sbr.rel target = $region3
    $region8: #{tpu_custom_call.1} parent=1 // loop_exit
      _
    %422 = vsyncpa [#allocation3], 1
    %s423 = scalar_lea.sflag [#allocation3], 1
    %424 = vsyncpa %s423, 1
    %425 = vsyncpa [#allocation6], 1
    %s426 = scalar_lea.sflag [#allocation6], 1
    %427 = vsyncpa %s426, 1
    %428 = vsyncpa [#allocation4], 1
    %s429 = scalar_lea.sflag [#allocation4], 1
    %430 = vsyncpa %s429, 1

</llo_original>
